<compile_context>
chip_gen: v5e
topology: v5e:2x2
jax: 0.10.0
libtpu: 0.0.40
codegen_flags: <defaults>
</compile_context>

<pallas_src>
import functools

import jax
import jax.numpy as jnp
from jax.experimental import pallas as pl
from jax.experimental.pallas import tpu as pltpu


def _fused_gather_lstm_kernel(ids_ref, tab_ref, wih_ref, whh_ref, b_ref,
                              hN_ref, *, T, B, D, H, N_ENT):
    """Entity gather + whole LSTM forward in ONE kernel invocation (no grid).

    ids_ref : (B, 1)        int32 entity ids
    tab_ref : (T, N_ENT, D) per-timestep node-embedding tables
    wih_ref : (D, 4H)       input->gates weights (pre-transposed)
    whh_ref : (H, 4H)       hidden->gates weights (pre-transposed)
    b_ref   : (1, 4H)       combined bias (b_ih + b_hh)
    hN_ref  : (B, H)        output: final hidden state h_n
    Gate order follows PyTorch nn.LSTM: [i | f | g | o].
    """
    f32 = jnp.float32

    # ---- fused entity gather: one-hot (B,N_ENT) @ (N_ENT,D) MXU gather ----
    ids = ids_ref[...]                                              # (B,1) i32
    ent_lanes = jax.lax.broadcasted_iota(jnp.int32, (B, N_ENT), 1)
    onehot = (ent_lanes == ids).astype(f32)                         # (B,N_ENT)

    wih = wih_ref[...]                                              # (D, 4H)
    bias = b_ref[...]                                               # (1, 4H)

    # Gather + input projection for ALL timesteps, hoisted OFF the serial
    # recurrent chain (no dependence on h): 2T tiny MXU ops done up front.
    p_steps = []
    for t in range(T):
        x_t = jnp.dot(onehot, tab_ref[t], preferred_element_type=f32)  # (B,D)
        p_steps.append(jnp.dot(x_t, wih, preferred_element_type=f32) + bias)

    whh = whh_ref[...]                                              # (H, 4H)

    # Hoisted lane mask: tanh for g-gate lanes [2H,3H), sigmoid elsewhere, so
    # each step costs one full-vreg sigmoid + one full-vreg tanh on the EUP
    # instead of four quarter-vreg activation passes.
    lane = jax.lax.broadcasted_iota(jnp.int32, (B, 4 * H), 1)
    g_lane = (lane >= 2 * H) & (lane < 3 * H)

    h = jnp.zeros((B, H), f32)
    c = jnp.zeros((B, H), f32)
    # T is small & static -> fully unrolled recurrence; per step the only
    # serial work is one (B,H)x(H,4H) matmul + gate elementwise math.
    for t in range(T):
        gates = p_steps[t] + jnp.dot(h, whh, preferred_element_type=f32)
        act = jnp.where(g_lane, jnp.tanh(gates), jax.nn.sigmoid(gates))
        i_g = act[:, 0 * H:1 * H]
        f_g = act[:, 1 * H:2 * H]
        g_g = act[:, 2 * H:3 * H]
        o_g = act[:, 3 * H:4 * H]
        c = f_g * c + i_g * g_g
        h = o_g * jnp.tanh(c)

    hN_ref[...] = h.astype(hN_ref.dtype)


def prepare_lstm_params(w_ih, w_hh, b_ih, b_hh):
    """One-time layout plumbing, hoisted off the per-call path."""
    H = w_hh.shape[1]
    wih_t = jnp.asarray(w_ih, jnp.float32).T                       # (D, 4H)
    whh_t = jnp.asarray(w_hh, jnp.float32).T                       # (H, 4H)
    bias = (jnp.asarray(b_ih, jnp.float32)
            + jnp.asarray(b_hh, jnp.float32)).reshape(1, 4 * H)
    return wih_t, whh_t, bias


@jax.jit
def model_forward_entities(embedding_tables, entities, wih_t, whh_t, bias):
    """Model.forward(entities, transR=False) == forward_entities(entities)."""
    T, N_ENT, D = embedding_tables.shape
    B = entities.shape[0]
    H = whh_t.shape[0]

    ids_2d = entities.reshape(B, 1).astype(jnp.int32)
    tab = embedding_tables.astype(jnp.float32)

    flops = 2 * T * B * (N_ENT * D + D * 4 * H + H * 4 * H)
    transcendentals = T * B * (2 * 4 * H + H)
    bytes_accessed = 4 * (ids_2d.size + tab.size + wih_t.size
                          + whh_t.size + bias.size + B * H)

    kernel = functools.partial(_fused_gather_lstm_kernel,
                               T=T, B=B, D=D, H=H, N_ENT=N_ENT)
    vmem = pltpu.MemorySpace.VMEM
    return pl.pallas_call(
        kernel,
        out_shape=jax.ShapeDtypeStruct((B, H), jnp.float32),
        in_specs=[pl.BlockSpec(memory_space=vmem)] * 5,
        out_specs=pl.BlockSpec(memory_space=vmem),
        cost_estimate=pl.CostEstimate(flops=flops,
                                      transcendentals=transcendentals,
                                      bytes_accessed=bytes_accessed),
    )(ids_2d, tab, wih_t, whh_t, bias)


def _lstm_reference(x_tbd, w_ih, w_hh, b_ih, b_hh):
    """Pure-JAX reference (PyTorch nn.LSTM semantics) for a sanity check."""
    T, B, D = x_tbd.shape
    H = w_hh.shape[1]

    def step(carry, x_t):
        h, c = carry
        gates = x_t @ w_ih.T + h @ w_hh.T + b_ih + b_hh
        i = jax.nn.sigmoid(gates[:, 0 * H:1 * H])
        f = jax.nn.sigmoid(gates[:, 1 * H:2 * H])
        g = jnp.tanh(gates[:, 2 * H:3 * H])
        o = jax.nn.sigmoid(gates[:, 3 * H:4 * H])
        c = f * c + i * g
        h = o * jnp.tanh(c)
        return (h, c), None

    (h, _), _ = jax.lax.scan(step,
                             (jnp.zeros((B, H), jnp.float32),
                              jnp.zeros((B, H), jnp.float32)),
                             x_tbd)
    return h


if __name__ == "__main__":
    # Config: entity_embedding_dim=32, n_layers=1 (concat_layers => mult=1),
    # n_timesplits=4, batch of 8 entity ids out of 16 total nodes.
    D = H = 32          # entity_embedding_dim * mult
    T = 4               # n_timesplits (len(layer_generators)); time_start=1 is
                        # modeled by the tables already covering that window.
    B = 8               # batch of entity ids
    N_ENT = 16

    key = jax.random.PRNGKey(0)
    k_emb, k_wih, k_whh, k_bih, k_bhh, k_ids = jax.random.split(key, 6)

    # Deterministic "TransrAggregator output": per-timestep embedding tables.
    embedding_tables = jax.random.normal(k_emb, (T, N_ENT, D), jnp.float32) * 0.5

    # Deterministic LSTM parameters (PyTorch nn.LSTM shapes).
    scale = 1.0 / jnp.sqrt(H)
    w_ih = jax.random.uniform(k_wih, (4 * H, D), jnp.float32, -scale, scale)
    w_hh = jax.random.uniform(k_whh, (4 * H, H), jnp.float32, -scale, scale)
    b_ih = jax.random.uniform(k_bih, (4 * H,), jnp.float32, -scale, scale)
    b_hh = jax.random.uniform(k_bhh, (4 * H,), jnp.float32, -scale, scale)

    entities = jax.random.randint(k_ids, (B,), 0, N_ENT, jnp.int32)

    # One-time parameter preparation (off the per-call path).
    wih_t, whh_t, bias = prepare_lstm_params(w_ih, w_hh, b_ih, b_hh)

    h_n = model_forward_entities(embedding_tables, entities, wih_t, whh_t, bias)
    h_n = jax.block_until_ready(h_n)
    assert h_n.shape == (B, H), h_n.shape

    # Correctness check vs pure-JAX LSTM reference (PyTorch semantics).
    x_tbd = embedding_tables[:, entities, :]          # plain gather reference
    h_ref = _lstm_reference(x_tbd, w_ih, w_hh, b_ih, b_hh)
    assert jnp.allclose(h_n, h_ref, atol=1e-5, rtol=1e-5), (
        float(jnp.max(jnp.abs(h_n - h_ref))))

    print("KERNEL_OK")
</pallas_src>

<mosaic_0001>
module attributes {stable_mosaic.version = 11 : i64} {
  func.func @_fused_gather_lstm_kernel(%arg0: memref<8x1xi32, #tpu.memory_space<vmem>>, %arg1: memref<4x16x32xf32, #tpu.memory_space<vmem>>, %arg2: memref<32x128xf32, #tpu.memory_space<vmem>>, %arg3: memref<32x128xf32, #tpu.memory_space<vmem>>, %arg4: memref<1x128xf32, #tpu.memory_space<vmem>>, %arg5: memref<8x32xf32, #tpu.memory_space<vmem>>) attributes {dimension_semantics = [], scalar_prefetch = 0 : i64, scratch_operands = 0 : i64, tpu.core_type = #tpu.core_type<tc>} {
    %c0 = arith.constant 0 : index
    %c0_0 = arith.constant 0 : index
    %0 = vector.load %arg0[%c0, %c0_0] : memref<8x1xi32, #tpu.memory_space<vmem>>, vector<8x1xi32>
    %1 = tpu.iota {dimensions = array<i32: 1>} : vector<8x16xi32>
    %2 = vector.broadcast %0 : vector<8x1xi32> to vector<8x16xi32>
    %3 = arith.cmpi eq, %1, %2 : vector<8x16xi32>
    %4 = arith.extui %3 : vector<8x16xi1> to vector<8x16xi32>
    %5 = arith.sitofp %4 : vector<8x16xi32> to vector<8x16xf32>
    %c0_1 = arith.constant 0 : index
    %c0_2 = arith.constant 0 : index
    %6 = vector.load %arg2[%c0_1, %c0_2] : memref<32x128xf32, #tpu.memory_space<vmem>>, vector<32x128xf32>
    %c0_3 = arith.constant 0 : index
    %c0_4 = arith.constant 0 : index
    %7 = vector.load %arg4[%c0_3, %c0_4] : memref<1x128xf32, #tpu.memory_space<vmem>>, vector<1x128xf32>
    %c0_5 = arith.constant 0 : index
    %c0_6 = arith.constant 0 : index
    %c0_7 = arith.constant 0 : index
    %8 = vector.load %arg1[%c0_5, %c0_6, %c0_7] : memref<4x16x32xf32, #tpu.memory_space<vmem>>, vector<1x16x32xf32>
    %9 = vector.shape_cast %8 : vector<1x16x32xf32> to vector<16x32xf32>
    %cst = arith.constant dense<0.000000e+00> : vector<8x32xf32>
    %10 = tpu.matmul %5, %9, %cst {dimension_numbers = #tpu.dot_dimension_numbers<[1], [0], [0], [1], [0, 0, 1, 1], [], []>} : vector<8x16xf32>, vector<16x32xf32>, vector<8x32xf32> -> vector<8x32xf32>
    %cst_8 = arith.constant dense<0.000000e+00> : vector<8x128xf32>
    %11 = tpu.matmul %10, %6, %cst_8 {dimension_numbers = #tpu.dot_dimension_numbers<[1], [0], [0], [1], [0, 0, 1, 1], [], []>} : vector<8x32xf32>, vector<32x128xf32>, vector<8x128xf32> -> vector<8x128xf32>
    %12 = vector.broadcast %7 : vector<1x128xf32> to vector<8x128xf32>
    %13 = arith.addf %11, %12 : vector<8x128xf32>
    %c1 = arith.constant 1 : index
    %c0_9 = arith.constant 0 : index
    %c0_10 = arith.constant 0 : index
    %14 = vector.load %arg1[%c1, %c0_9, %c0_10] : memref<4x16x32xf32, #tpu.memory_space<vmem>>, vector<1x16x32xf32>
    %15 = vector.shape_cast %14 : vector<1x16x32xf32> to vector<16x32xf32>
    %cst_11 = arith.constant dense<0.000000e+00> : vector<8x32xf32>
    %16 = tpu.matmul %5, %15, %cst_11 {dimension_numbers = #tpu.dot_dimension_numbers<[1], [0], [0], [1], [0, 0, 1, 1], [], []>} : vector<8x16xf32>, vector<16x32xf32>, vector<8x32xf32> -> vector<8x32xf32>
    %cst_12 = arith.constant dense<0.000000e+00> : vector<8x128xf32>
    %17 = tpu.matmul %16, %6, %cst_12 {dimension_numbers = #tpu.dot_dimension_numbers<[1], [0], [0], [1], [0, 0, 1, 1], [], []>} : vector<8x32xf32>, vector<32x128xf32>, vector<8x128xf32> -> vector<8x128xf32>
    %18 = vector.broadcast %7 : vector<1x128xf32> to vector<8x128xf32>
    %19 = arith.addf %17, %18 : vector<8x128xf32>
    %c2 = arith.constant 2 : index
    %c0_13 = arith.constant 0 : index
    %c0_14 = arith.constant 0 : index
    %20 = vector.load %arg1[%c2, %c0_13, %c0_14] : memref<4x16x32xf32, #tpu.memory_space<vmem>>, vector<1x16x32xf32>
    %21 = vector.shape_cast %20 : vector<1x16x32xf32> to vector<16x32xf32>
    %cst_15 = arith.constant dense<0.000000e+00> : vector<8x32xf32>
    %22 = tpu.matmul %5, %21, %cst_15 {dimension_numbers = #tpu.dot_dimension_numbers<[1], [0], [0], [1], [0, 0, 1, 1], [], []>} : vector<8x16xf32>, vector<16x32xf32>, vector<8x32xf32> -> vector<8x32xf32>
    %cst_16 = arith.constant dense<0.000000e+00> : vector<8x128xf32>
    %23 = tpu.matmul %22, %6, %cst_16 {dimension_numbers = #tpu.dot_dimension_numbers<[1], [0], [0], [1], [0, 0, 1, 1], [], []>} : vector<8x32xf32>, vector<32x128xf32>, vector<8x128xf32> -> vector<8x128xf32>
    %24 = vector.broadcast %7 : vector<1x128xf32> to vector<8x128xf32>
    %25 = arith.addf %23, %24 : vector<8x128xf32>
    %c3 = arith.constant 3 : index
    %c0_17 = arith.constant 0 : index
    %c0_18 = arith.constant 0 : index
    %26 = vector.load %arg1[%c3, %c0_17, %c0_18] : memref<4x16x32xf32, #tpu.memory_space<vmem>>, vector<1x16x32xf32>
    %27 = vector.shape_cast %26 : vector<1x16x32xf32> to vector<16x32xf32>
    %cst_19 = arith.constant dense<0.000000e+00> : vector<8x32xf32>
    %28 = tpu.matmul %5, %27, %cst_19 {dimension_numbers = #tpu.dot_dimension_numbers<[1], [0], [0], [1], [0, 0, 1, 1], [], []>} : vector<8x16xf32>, vector<16x32xf32>, vector<8x32xf32> -> vector<8x32xf32>
    %cst_20 = arith.constant dense<0.000000e+00> : vector<8x128xf32>
    %29 = tpu.matmul %28, %6, %cst_20 {dimension_numbers = #tpu.dot_dimension_numbers<[1], [0], [0], [1], [0, 0, 1, 1], [], []>} : vector<8x32xf32>, vector<32x128xf32>, vector<8x128xf32> -> vector<8x128xf32>
    %30 = vector.broadcast %7 : vector<1x128xf32> to vector<8x128xf32>
    %31 = arith.addf %29, %30 : vector<8x128xf32>
    %c0_21 = arith.constant 0 : index
    %c0_22 = arith.constant 0 : index
    %32 = vector.load %arg3[%c0_21, %c0_22] : memref<32x128xf32, #tpu.memory_space<vmem>>, vector<32x128xf32>
    %33 = tpu.iota {dimensions = array<i32: 1>} : vector<8x128xi32>
    %c64_i32 = arith.constant 64 : i32
    %34 = vector.broadcast %c64_i32 : i32 to vector<8x128xi32>
    %35 = arith.cmpi sge, %33, %34 : vector<8x128xi32>
    %c96_i32 = arith.constant 96 : i32
    %36 = vector.broadcast %c96_i32 : i32 to vector<8x128xi32>
    %37 = arith.cmpi slt, %33, %36 : vector<8x128xi32>
    %38 = arith.andi %35, %37 : vector<8x128xi1>
    %cst_23 = arith.constant 0.000000e+00 : f32
    %39 = vector.broadcast %cst_23 : f32 to vector<8x32xf32>
    %cst_24 = arith.constant 0.000000e+00 : f32
    %40 = vector.broadcast %cst_24 : f32 to vector<8x32xf32>
    %cst_25 = arith.constant dense<0.000000e+00> : vector<8x128xf32>
    %41 = tpu.matmul %39, %32, %cst_25 {dimension_numbers = #tpu.dot_dimension_numbers<[1], [0], [0], [1], [0, 0, 1, 1], [], []>} : vector<8x32xf32>, vector<32x128xf32>, vector<8x128xf32> -> vector<8x128xf32>
    %42 = arith.addf %13, %41 : vector<8x128xf32>
    %43 = math.tanh %42 : vector<8x128xf32>
    %44 = arith.negf %42 : vector<8x128xf32>
    %45 = math.exp %44 : vector<8x128xf32>
    %cst_26 = arith.constant 1.000000e+00 : f32
    %46 = vector.broadcast %cst_26 : f32 to vector<8x128xf32>
    %47 = arith.addf %46, %45 : vector<8x128xf32>
    %48 = arith.divf %46, %47 : vector<8x128xf32>
    %49 = arith.select %38, %43, %48 : vector<8x128xi1>, vector<8x128xf32>
    %50 = vector.extract_strided_slice %49 {offsets = [0, 0], sizes = [8, 32], strides = [1, 1]} : vector<8x128xf32> to vector<8x32xf32>
    %51 = vector.extract_strided_slice %49 {offsets = [0, 32], sizes = [8, 32], strides = [1, 1]} : vector<8x128xf32> to vector<8x32xf32>
    %52 = vector.extract_strided_slice %49 {offsets = [0, 64], sizes = [8, 32], strides = [1, 1]} : vector<8x128xf32> to vector<8x32xf32>
    %53 = vector.extract_strided_slice %49 {offsets = [0, 96], sizes = [8, 32], strides = [1, 1]} : vector<8x128xf32> to vector<8x32xf32>
    %54 = arith.mulf %51, %40 : vector<8x32xf32>
    %55 = arith.mulf %50, %52 : vector<8x32xf32>
    %56 = arith.addf %54, %55 : vector<8x32xf32>
    %57 = math.tanh %56 : vector<8x32xf32>
    %58 = arith.mulf %53, %57 : vector<8x32xf32>
    %cst_27 = arith.constant dense<0.000000e+00> : vector<8x128xf32>
    %59 = tpu.matmul %58, %32, %cst_27 {dimension_numbers = #tpu.dot_dimension_numbers<[1], [0], [0], [1], [0, 0, 1, 1], [], []>} : vector<8x32xf32>, vector<32x128xf32>, vector<8x128xf32> -> vector<8x128xf32>
    %60 = arith.addf %19, %59 : vector<8x128xf32>
    %61 = math.tanh %60 : vector<8x128xf32>
    %62 = arith.negf %60 : vector<8x128xf32>
    %63 = math.exp %62 : vector<8x128xf32>
    %cst_28 = arith.constant 1.000000e+00 : f32
    %64 = vector.broadcast %cst_28 : f32 to vector<8x128xf32>
    %65 = arith.addf %64, %63 : vector<8x128xf32>
    %66 = arith.divf %64, %65 : vector<8x128xf32>
    %67 = arith.select %38, %61, %66 : vector<8x128xi1>, vector<8x128xf32>
    %68 = vector.extract_strided_slice %67 {offsets = [0, 0], sizes = [8, 32], strides = [1, 1]} : vector<8x128xf32> to vector<8x32xf32>
    %69 = vector.extract_strided_slice %67 {offsets = [0, 32], sizes = [8, 32], strides = [1, 1]} : vector<8x128xf32> to vector<8x32xf32>
    %70 = vector.extract_strided_slice %67 {offsets = [0, 64], sizes = [8, 32], strides = [1, 1]} : vector<8x128xf32> to vector<8x32xf32>
    %71 = vector.extract_strided_slice %67 {offsets = [0, 96], sizes = [8, 32], strides = [1, 1]} : vector<8x128xf32> to vector<8x32xf32>
    %72 = arith.mulf %69, %56 : vector<8x32xf32>
    %73 = arith.mulf %68, %70 : vector<8x32xf32>
    %74 = arith.addf %72, %73 : vector<8x32xf32>
    %75 = math.tanh %74 : vector<8x32xf32>
    %76 = arith.mulf %71, %75 : vector<8x32xf32>
    %cst_29 = arith.constant dense<0.000000e+00> : vector<8x128xf32>
    %77 = tpu.matmul %76, %32, %cst_29 {dimension_numbers = #tpu.dot_dimension_numbers<[1], [0], [0], [1], [0, 0, 1, 1], [], []>} : vector<8x32xf32>, vector<32x128xf32>, vector<8x128xf32> -> vector<8x128xf32>
    %78 = arith.addf %25, %77 : vector<8x128xf32>
    %79 = math.tanh %78 : vector<8x128xf32>
    %80 = arith.negf %78 : vector<8x128xf32>
    %81 = math.exp %80 : vector<8x128xf32>
    %cst_30 = arith.constant 1.000000e+00 : f32
    %82 = vector.broadcast %cst_30 : f32 to vector<8x128xf32>
    %83 = arith.addf %82, %81 : vector<8x128xf32>
    %84 = arith.divf %82, %83 : vector<8x128xf32>
    %85 = arith.select %38, %79, %84 : vector<8x128xi1>, vector<8x128xf32>
    %86 = vector.extract_strided_slice %85 {offsets = [0, 0], sizes = [8, 32], strides = [1, 1]} : vector<8x128xf32> to vector<8x32xf32>
    %87 = vector.extract_strided_slice %85 {offsets = [0, 32], sizes = [8, 32], strides = [1, 1]} : vector<8x128xf32> to vector<8x32xf32>
    %88 = vector.extract_strided_slice %85 {offsets = [0, 64], sizes = [8, 32], strides = [1, 1]} : vector<8x128xf32> to vector<8x32xf32>
    %89 = vector.extract_strided_slice %85 {offsets = [0, 96], sizes = [8, 32], strides = [1, 1]} : vector<8x128xf32> to vector<8x32xf32>
    %90 = arith.mulf %87, %74 : vector<8x32xf32>
    %91 = arith.mulf %86, %88 : vector<8x32xf32>
    %92 = arith.addf %90, %91 : vector<8x32xf32>
    %93 = math.tanh %92 : vector<8x32xf32>
    %94 = arith.mulf %89, %93 : vector<8x32xf32>
    %cst_31 = arith.constant dense<0.000000e+00> : vector<8x128xf32>
    %95 = tpu.matmul %94, %32, %cst_31 {dimension_numbers = #tpu.dot_dimension_numbers<[1], [0], [0], [1], [0, 0, 1, 1], [], []>} : vector<8x32xf32>, vector<32x128xf32>, vector<8x128xf32> -> vector<8x128xf32>
    %96 = arith.addf %31, %95 : vector<8x128xf32>
    %97 = math.tanh %96 : vector<8x128xf32>
    %98 = arith.negf %96 : vector<8x128xf32>
    %99 = math.exp %98 : vector<8x128xf32>
    %cst_32 = arith.constant 1.000000e+00 : f32
    %100 = vector.broadcast %cst_32 : f32 to vector<8x128xf32>
    %101 = arith.addf %100, %99 : vector<8x128xf32>
    %102 = arith.divf %100, %101 : vector<8x128xf32>
    %103 = arith.select %38, %97, %102 : vector<8x128xi1>, vector<8x128xf32>
    %104 = vector.extract_strided_slice %103 {offsets = [0, 0], sizes = [8, 32], strides = [1, 1]} : vector<8x128xf32> to vector<8x32xf32>
    %105 = vector.extract_strided_slice %103 {offsets = [0, 32], sizes = [8, 32], strides = [1, 1]} : vector<8x128xf32> to vector<8x32xf32>
    %106 = vector.extract_strided_slice %103 {offsets = [0, 64], sizes = [8, 32], strides = [1, 1]} : vector<8x128xf32> to vector<8x32xf32>
    %107 = vector.extract_strided_slice %103 {offsets = [0, 96], sizes = [8, 32], strides = [1, 1]} : vector<8x128xf32> to vector<8x32xf32>
    %108 = arith.mulf %105, %92 : vector<8x32xf32>
    %109 = arith.mulf %104, %106 : vector<8x32xf32>
    %110 = arith.addf %108, %109 : vector<8x32xf32>
    %111 = math.tanh %110 : vector<8x32xf32>
    %112 = arith.mulf %107, %111 : vector<8x32xf32>
    %c0_33 = arith.constant 0 : index
    %c0_34 = arith.constant 0 : index
    %113 = vector.load %arg5[%c0_33, %c0_34] : memref<8x32xf32, #tpu.memory_space<vmem>>, vector<8x32xf32>
    tpu.vector_store %arg5[%c0_33, %c0_34], %112 {strides = array<i32>} : memref<8x32xf32, #tpu.memory_space<vmem>>, vector<8x32xf32>,
    return
  }
}

</mosaic_0001>

<llo_original>
// kernel: model_forward_entities.1
$region0: #{model_forward_entities.1}
  #allocation0 [shape = 'u32[]', space=smem, size = 0x4, offset = 0x4, fixed_abs, tag = 'smem constant byte address 0x4 - core index']
  #allocation1 [shape = 'u32[72,128]{1,0:T(1,128)}', space=vmem, size = 0x9000, scoped, tag = 'internal scratch']
  %s0 = inlined_call_operand.vmem [shape: s32[8,1], index: 0, kind: input, shape index: {}]
  %s1 = inlined_call_operand.hbm [shape: f32[4,16,32], index: 1, kind: input, shape index: {}]
  %s2 = inlined_call_operand.hbm [shape: f32[32,128], index: 2, kind: input, shape index: {}]
  %s3 = inlined_call_operand.hbm [shape: f32[32,128], index: 3, kind: input, shape index: {}]
  %s4 = inlined_call_operand.vmem [shape: f32[1,128], index: 4, kind: input, shape index: {}]
  %s5 = inlined_call_operand.hbm [shape: f32[8,32], index: 5, kind: output, shape index: {}]
  %s6 = sld [smem:[#allocation0]]
  $region42: #{model_forward_entities.1} parent=0
    _
  %s8 = ssub.s32 1, %s6
  %s9 = scalar_select 0, %s8, %s6
  $region1: #{model_forward_entities.1} parent=0
    #allocation2 [shape = 'u8[32768]{0}', space=vmem, size = 0x8000, scoped, tag = 'input window, operand 1, single buffered']
    #allocation3 [shape = 's32[1]{0}', space=sflag, size = 0x4, scoped, tag = 'scoped memory for model_forward_entities.1']
    #allocation4 [shape = 's32[1]{0}', space=sflag, size = 0x4, scoped, tag = 'scoped memory for model_forward_entities.1']
    #allocation5 [shape = 'u8[16384]{0}', space=vmem, size = 0x4000, scoped, tag = 'input window, operand 2, single buffered']
    #allocation6 [shape = 's32[1]{0}', space=sflag, size = 0x4, scoped, tag = 'scoped memory for model_forward_entities.1']
    #allocation7 [shape = 'u8[16384]{0}', space=vmem, size = 0x4000, scoped, tag = 'input window, operand 3, single buffered']
    #allocation8 [shape = 'u8[4096]{0}', space=vmem, size = 0x1000, scoped, tag = 'output window, operand 0, single buffered']
    %10 = vsyncpa [#allocation3], 0
    %11 = vsyncpa [#allocation6], 0
    %12 = vsyncpa [#allocation4], 0
    // Predicated region
    $region2: #{model_forward_entities.1} parent=1 // pred_check
      _
    $region3: #{model_forward_entities.1} parent=1 // pred_check_branch
      %14 = sbr.rel (0) target = $region5
    $region4: #{model_forward_entities.1} parent=1 // pred_region
      _
    $region5: #{model_forward_entities.1} parent=1 // pred_fallthru
      _
    // Predicated region
    $region6: #{model_forward_entities.1} parent=1 // pred_check
      _
    $region7: #{model_forward_entities.1} parent=1 // pred_check_branch
      %16 = sbr.rel (0) target = $region9
    $region8: #{model_forward_entities.1} parent=1 // pred_region
      %18 = vsyncadd [#allocation3], 0
      %s19 = sshll.u32 %s1, 4
      %s20 = int_to_ptr.hbm [resolvable:$true] %s19
      %s21 = sshll.u32 [#allocation2], 4
      %s22 = int_to_ptr.vmem [resolvable:$true] %s21
      %27 = dma.hbm_to_vmem [thread:$0]  %s20, 1024, %s22, [#allocation3], 128, 128, 8
    $region9: #{model_forward_entities.1} parent=1 // pred_fallthru
      _
    // Predicated region
    $region10: #{model_forward_entities.1} parent=1 // pred_check
      _
    $region11: #{model_forward_entities.1} parent=1 // pred_check_branch
      %29 = sbr.rel (0) target = $region13
    $region12: #{model_forward_entities.1} parent=1 // pred_region
      %31 = vsyncadd [#allocation6], 0
      %s32 = sshll.u32 %s2, 4
      %s33 = int_to_ptr.hbm [resolvable:$true] %s32
      %s34 = sshll.u32 [#allocation5], 4
      %s35 = int_to_ptr.vmem [resolvable:$true] %s34
      %40 = dma.hbm_to_vmem [thread:$0]  %s33, 512, %s35, [#allocation6], 128, 128, 8
    $region13: #{model_forward_entities.1} parent=1 // pred_fallthru
      _
    // Predicated region
    $region14: #{model_forward_entities.1} parent=1 // pred_check
      _
    $region15: #{model_forward_entities.1} parent=1 // pred_check_branch
      %42 = sbr.rel (0) target = $region17
    $region16: #{model_forward_entities.1} parent=1 // pred_region
      %44 = vsyncadd [#allocation6], 0
      %s45 = sshll.u32 %s3, 4
      %s46 = int_to_ptr.hbm [resolvable:$true] %s45
      %s47 = sshll.u32 [#allocation7], 4
      %s48 = int_to_ptr.vmem [resolvable:$true] %s47
      %53 = dma.hbm_to_vmem [thread:$0]  %s46, 512, %s48, [#allocation6], 128, 128, 8
    $region17: #{model_forward_entities.1} parent=1 // pred_fallthru
      _
    // Predicated region
    $region18: #{model_forward_entities.1} parent=1 // pred_check
      _
    $region19: #{model_forward_entities.1} parent=1 // pred_check_branch
      %55 = sbr.rel (0) target = $region21
    $region20: #{model_forward_entities.1} parent=1 // pred_region
      _
    $region21: #{model_forward_entities.1} parent=1 // pred_fallthru
      _
    // Predicated region
    $region22: #{model_forward_entities.1} parent=1 // pred_check
      _
    $region23: #{model_forward_entities.1} parent=1 // pred_check_branch
      %57 = sbr.rel (0) target = $region25
    $region24: #{model_forward_entities.1} parent=1 // pred_region
      %59 = dma.done [#allocation3], 1024
    $region25: #{model_forward_entities.1} parent=1 // pred_fallthru
      _
    // Predicated region
    $region26: #{model_forward_entities.1} parent=1 // pred_check
      _
    $region27: #{model_forward_entities.1} parent=1 // pred_check_branch
      %61 = sbr.rel (0) target = $region29
    $region28: #{model_forward_entities.1} parent=1 // pred_region
      %63 = dma.done [#allocation6], 512
    $region29: #{model_forward_entities.1} parent=1 // pred_fallthru
      _
    // Predicated region
    $region30: #{model_forward_entities.1} parent=1 // pred_check
      _
    $region31: #{model_forward_entities.1} parent=1 // pred_check_branch
      %65 = sbr.rel (0) target = $region33
    $region32: #{model_forward_entities.1} parent=1 // pred_region
      %67 = dma.done [#allocation6], 512
    $region33: #{model_forward_entities.1} parent=1 // pred_fallthru
      _
    %v68 = vld [vmem:[%s0] sm:$0xff]
    %v69 = vlaneseq
    %v70 = vand.u32 %v69, 127
    %71 = vset.pattern.permute.xlu0 0
    %72 = vperm.xlu0 %71, %v68
    %v73 = vpop.permute.xlu0 %72
    %vm74 = vcmp.eq.s32.totalorder %v70, %v73
    %v75 = vsel %vm74, 1, 0
    %v76 = vcvt.s32.f32 %v75
    %v77 = vld [vmem:[#allocation5] sm:$0xff]
    %v78 = vld [vmem:[#allocation5 + $0x8] sm:$0xff]
    %v79 = vld [vmem:[#allocation5 + $0x10] sm:$0xff]
    %v80 = vld [vmem:[#allocation5 + $0x18] sm:$0xff]
    %v81 = vld [vmem:[%s4] sm:$0x1]
    %v82 = vld [vmem:[#allocation2] sm:$0xff]
    %v83 = vld [vmem:[#allocation2 + $0x8] sm:$0xff]
    %vm84 = vcmask 130048
    %v86 = vsel %vm84, %v76, 0
    %88 = vmatpush.msra.mxu0 0.0
    %89 = vmatpush.msra.mxu0 0.0
    %90 = vmatpush.msra.mxu0 0.0
    %91 = vmatpush.msra.mxu0 0.0
    %92 = vmatpush.msra.mxu0 0.0
    %93 = vmatpush.msra.mxu0 0.0
    %94 = vmatpush.msra.mxu0 0.0
    %95 = vmatpush.msra.mxu0 0.0
    %96 = vmatpush.msra.mxu0 0.0
    %97 = vmatpush.msra.mxu0 0.0
    %98 = vmatpush.msra.mxu0 0.0
    %99 = vmatpush.msra.mxu0 0.0
    %100 = vmatpush.msra.mxu0 0.0
    %101 = vmatpush.msra.mxu0 0.0
    %102 = vmatpush.msra.mxu0 %v83
    %103 = vmatpush.msra.mxu0 %v82
    %104 = vmatmul.f32.gmra.mxu0 %v86
    %v105 = vpop.f32.mrf.mxu0
    %v106 = vadd.f32 0.0, %v105
    %107 = vdwg.mxu0
    %v109 = vperm.slane %v81, 0
    %vm111 = vcmask 261120
    %v113 = vsel %vm111, %v106, 0
    %115 = vmatpush.msra.mxu0 0.0
    %116 = vmatpush.msra.mxu0 0.0
    %117 = vmatpush.msra.mxu0 0.0
    %118 = vmatpush.msra.mxu0 0.0
    %119 = vmatpush.msra.mxu0 0.0
    %120 = vmatpush.msra.mxu0 0.0
    %121 = vmatpush.msra.mxu0 0.0
    %122 = vmatpush.msra.mxu0 0.0
    %123 = vmatpush.msra.mxu0 0.0
    %124 = vmatpush.msra.mxu0 0.0
    %125 = vmatpush.msra.mxu0 0.0
    %126 = vmatpush.msra.mxu0 0.0
    %127 = vmatpush.msra.mxu0 %v80
    %128 = vmatpush.msra.mxu0 %v79
    %129 = vmatpush.msra.mxu0 %v78
    %130 = vmatpush.msra.mxu0 %v77
    %131 = vmatmul.f32.gmra.mxu0 %v113
    %v132 = vpop.f32.mrf.mxu0
    %v133 = vadd.f32 %v109, %v132
    %134 = vdwg.mxu0
    %s135 = scalar_lea.vmem [#allocation2], 16
    %v136 = vld [vmem:[%s135] sm:$0xff]
    %v137 = vld [vmem:[%s135 + $0x8] sm:$0xff]
    %138 = vmatpush.msra.mxu0 0.0
    %139 = vmatpush.msra.mxu0 0.0
    %140 = vmatpush.msra.mxu0 0.0
    %141 = vmatpush.msra.mxu0 0.0
    %142 = vmatpush.msra.mxu0 0.0
    %143 = vmatpush.msra.mxu0 0.0
    %144 = vmatpush.msra.mxu0 0.0
    %145 = vmatpush.msra.mxu0 0.0
    %146 = vmatpush.msra.mxu0 0.0
    %147 = vmatpush.msra.mxu0 0.0
    %148 = vmatpush.msra.mxu0 0.0
    %149 = vmatpush.msra.mxu0 0.0
    %150 = vmatpush.msra.mxu0 0.0
    %151 = vmatpush.msra.mxu0 0.0
    %152 = vmatpush.msra.mxu0 %v137
    %153 = vmatpush.msra.mxu0 %v136
    %154 = vmatmul.f32.gmra.mxu0 %v86
    %v155 = vpop.f32.mrf.mxu0
    %v156 = vadd.f32 0.0, %v155
    %157 = vdwg.mxu0
    %v159 = vsel %vm111, %v156, 0
    %161 = vmatpush.msra.mxu0 0.0
    %162 = vmatpush.msra.mxu0 0.0
    %163 = vmatpush.msra.mxu0 0.0
    %164 = vmatpush.msra.mxu0 0.0
    %165 = vmatpush.msra.mxu0 0.0
    %166 = vmatpush.msra.mxu0 0.0
    %167 = vmatpush.msra.mxu0 0.0
    %168 = vmatpush.msra.mxu0 0.0
    %169 = vmatpush.msra.mxu0 0.0
    %170 = vmatpush.msra.mxu0 0.0
    %171 = vmatpush.msra.mxu0 0.0
    %172 = vmatpush.msra.mxu0 0.0
    %173 = vmatpush.msra.mxu0 %v80
    %174 = vmatpush.msra.mxu0 %v79
    %175 = vmatpush.msra.mxu0 %v78
    %176 = vmatpush.msra.mxu0 %v77
    %177 = vmatmul.f32.gmra.mxu0 %v159
    %v178 = vpop.f32.mrf.mxu0
    %v179 = vadd.f32 %v109, %v178
    %180 = vdwg.mxu0
    %s181 = scalar_lea.vmem [#allocation2], 32
    %v182 = vld [vmem:[%s181] sm:$0xff]
    %v183 = vld [vmem:[%s181 + $0x8] sm:$0xff]
    %184 = vmatpush.msra.mxu0 0.0
    %185 = vmatpush.msra.mxu0 0.0
    %186 = vmatpush.msra.mxu0 0.0
    %187 = vmatpush.msra.mxu0 0.0
    %188 = vmatpush.msra.mxu0 0.0
    %189 = vmatpush.msra.mxu0 0.0
    %190 = vmatpush.msra.mxu0 0.0
    %191 = vmatpush.msra.mxu0 0.0
    %192 = vmatpush.msra.mxu0 0.0
    %193 = vmatpush.msra.mxu0 0.0
    %194 = vmatpush.msra.mxu0 0.0
    %195 = vmatpush.msra.mxu0 0.0
    %196 = vmatpush.msra.mxu0 0.0
    %197 = vmatpush.msra.mxu0 0.0
    %198 = vmatpush.msra.mxu0 %v183
    %199 = vmatpush.msra.mxu0 %v182
    %200 = vmatmul.f32.gmra.mxu0 %v86
    %v201 = vpop.f32.mrf.mxu0
    %v202 = vadd.f32 0.0, %v201
    %203 = vdwg.mxu0
    %v205 = vsel %vm111, %v202, 0
    %207 = vmatpush.msra.mxu0 0.0
    %208 = vmatpush.msra.mxu0 0.0
    %209 = vmatpush.msra.mxu0 0.0
    %210 = vmatpush.msra.mxu0 0.0
    %211 = vmatpush.msra.mxu0 0.0
    %212 = vmatpush.msra.mxu0 0.0
    %213 = vmatpush.msra.mxu0 0.0
    %214 = vmatpush.msra.mxu0 0.0
    %215 = vmatpush.msra.mxu0 0.0
    %216 = vmatpush.msra.mxu0 0.0
    %217 = vmatpush.msra.mxu0 0.0
    %218 = vmatpush.msra.mxu0 0.0
    %219 = vmatpush.msra.mxu0 %v80
    %220 = vmatpush.msra.mxu0 %v79
    %221 = vmatpush.msra.mxu0 %v78
    %222 = vmatpush.msra.mxu0 %v77
    %223 = vmatmul.f32.gmra.mxu0 %v205
    %v224 = vpop.f32.mrf.mxu0
    %v225 = vadd.f32 %v109, %v224
    %226 = vdwg.mxu0
    %s227 = scalar_lea.vmem [#allocation2], 48
    %v228 = vld [vmem:[%s227] sm:$0xff]
    %v229 = vld [vmem:[%s227 + $0x8] sm:$0xff]
    %230 = vmatpush.msra.mxu0 0.0
    %231 = vmatpush.msra.mxu0 0.0
    %232 = vmatpush.msra.mxu0 0.0
    %233 = vmatpush.msra.mxu0 0.0
    %234 = vmatpush.msra.mxu0 0.0
    %235 = vmatpush.msra.mxu0 0.0
    %236 = vmatpush.msra.mxu0 0.0
    %237 = vmatpush.msra.mxu0 0.0
    %238 = vmatpush.msra.mxu0 0.0
    %239 = vmatpush.msra.mxu0 0.0
    %240 = vmatpush.msra.mxu0 0.0
    %241 = vmatpush.msra.mxu0 0.0
    %242 = vmatpush.msra.mxu0 0.0
    %243 = vmatpush.msra.mxu0 0.0
    %244 = vmatpush.msra.mxu0 %v229
    %245 = vmatpush.msra.mxu0 %v228
    %246 = vmatmul.f32.gmra.mxu0 %v86
    %v247 = vpop.f32.mrf.mxu0
    %v248 = vadd.f32 0.0, %v247
    %249 = vdwg.mxu0
    %v251 = vsel %vm111, %v248, 0
    %253 = vmatpush.msra.mxu0 0.0
    %254 = vmatpush.msra.mxu0 0.0
    %255 = vmatpush.msra.mxu0 0.0
    %256 = vmatpush.msra.mxu0 0.0
    %257 = vmatpush.msra.mxu0 0.0
    %258 = vmatpush.msra.mxu0 0.0
    %259 = vmatpush.msra.mxu0 0.0
    %260 = vmatpush.msra.mxu0 0.0
    %261 = vmatpush.msra.mxu0 0.0
    %262 = vmatpush.msra.mxu0 0.0
    %263 = vmatpush.msra.mxu0 0.0
    %264 = vmatpush.msra.mxu0 0.0
    %265 = vmatpush.msra.mxu0 %v80
    %266 = vmatpush.msra.mxu0 %v79
    %267 = vmatpush.msra.mxu0 %v78
    %268 = vmatpush.msra.mxu0 %v77
    %269 = vmatmul.f32.gmra.mxu0 %v251
    %v270 = vpop.f32.mrf.mxu0
    %v271 = vadd.f32 %v109, %v270
    %272 = vdwg.mxu0
    %v273 = vld [vmem:[#allocation7] sm:$0xff]
    %v274 = vld [vmem:[#allocation7 + $0x8] sm:$0xff]
    %v275 = vld [vmem:[#allocation7 + $0x10] sm:$0xff]
    %v276 = vld [vmem:[#allocation7 + $0x18] sm:$0xff]
    %vm277 = vcmp.ge.s32.totalorder %v70, 64
    %vm278 = vcmp.lt.s32.totalorder %v70, 96
    %vm279 = vmand %vm277, %vm278
    %v281 = vsel %vm111, 0.0, 0
    %283 = vmatpush.msra.mxu0 0.0
    %284 = vmatpush.msra.mxu0 0.0
    %285 = vmatpush.msra.mxu0 0.0
    %286 = vmatpush.msra.mxu0 0.0
    %287 = vmatpush.msra.mxu0 0.0
    %288 = vmatpush.msra.mxu0 0.0
    %289 = vmatpush.msra.mxu0 0.0
    %290 = vmatpush.msra.mxu0 0.0
    %291 = vmatpush.msra.mxu0 0.0
    %292 = vmatpush.msra.mxu0 0.0
    %293 = vmatpush.msra.mxu0 0.0
    %294 = vmatpush.msra.mxu0 0.0
    %295 = vmatpush.msra.mxu0 %v276
    %296 = vmatpush.msra.mxu0 %v275
    %297 = vmatpush.msra.mxu0 %v274
    %298 = vmatpush.msra.mxu0 %v273
    %299 = vmatmul.f32.gmra.mxu0 %v281
    %v300 = vpop.f32.mrf.mxu0
    %v301 = vadd.f32 0.0, %v300
    %302 = vdwg.mxu0
    %v303 = vadd.f32 %v133, %v301
    %v304 = vtanh.pop %v303
    %v305 = vxor.u32 %v303, 2147483648
    %v306 = vmul.f32 %v305, 1.442695
    %v307 = vpow.pop %v306
    %v308 = vadd.f32 %v307, 1.0
    %v309 = vrcp.pop %v308
    %v310 = vmul.f32 %v308, %v309
    %v311 = vsub.f32 1.0, %v310
    %v312 = vmul.f32 %v309, %v311
    %v313 = vadd.f32 %v309, %v312
    %vm314 = vweird.f32 %v308
    %vm315 = vweird.f32 %v309
    %vm316 = vmor %vm314, %vm315
    %v317 = vsel %vm316, %v309, %v313
    %v318 = vand.u32 2147483647, %v308
    %vm319 = vcmp.eq.f32.partialorder %v318, 8.507059e+37
    %v320 = vand.u32 %v308, 2147483648
    %v321 = vor.u32 1.1754944e-38, %v320
    %v322 = vsel %vm319, %v321, %v317
    %v323 = vmul.f32 1.0, %v322
    %v324 = vsel %vm279, %v304, %v323
    %v325 = vmul.f32 %v324, 0.0
    %327 = vrot.lane.b32.xlu0 %v324, 64
    %v328 = vpop.permute.xlu0 %327
    %v330 = vmul.f32 %v324, %v328
    %332 = vrot.lane.b32.xlu0 %v330, 32
    %v333 = vpop.permute.xlu0 %332
    %v335 = vadd.f32 %v325, %v333
    %v336 = vtanh.pop %v335
    %338 = vrot.lane.b32.xlu0 %v336, 64
    %v339 = vpop.permute.xlu0 %338
    %v341 = vmul.f32 %v324, %v339
    %343 = vrot.lane.b32.xlu0 %v341, 32
    %v344 = vpop.permute.xlu0 %343
    %v345 = vsel %vm111, %v344, 0
    %347 = vmatpush.msra.mxu0 0.0
    %348 = vmatpush.msra.mxu0 0.0
    %349 = vmatpush.msra.mxu0 0.0
    %350 = vmatpush.msra.mxu0 0.0
    %351 = vmatpush.msra.mxu0 0.0
    %352 = vmatpush.msra.mxu0 0.0
    %353 = vmatpush.msra.mxu0 0.0
    %354 = vmatpush.msra.mxu0 0.0
    %355 = vmatpush.msra.mxu0 0.0
    %356 = vmatpush.msra.mxu0 0.0
    %357 = vmatpush.msra.mxu0 0.0
    %358 = vmatpush.msra.mxu0 0.0
    %359 = vmatpush.msra.mxu0 %v276
    %360 = vmatpush.msra.mxu0 %v275
    %361 = vmatpush.msra.mxu0 %v274
    %362 = vmatpush.msra.mxu0 %v273
    %363 = vmatmul.f32.gmra.mxu0 %v345
    %v364 = vpop.f32.mrf.mxu0
    %v365 = vadd.f32 0.0, %v364
    %366 = vdwg.mxu0
    %v367 = vadd.f32 %v179, %v365
    %v368 = vtanh.pop %v367
    %v369 = vxor.u32 %v367, 2147483648
    %v370 = vmul.f32 %v369, 1.442695
    %v371 = vpow.pop %v370
    %v372 = vadd.f32 %v371, 1.0
    %v373 = vrcp.pop %v372
    %v374 = vmul.f32 %v372, %v373
    %v375 = vsub.f32 1.0, %v374
    %v376 = vmul.f32 %v373, %v375
    %v377 = vadd.f32 %v373, %v376
    %vm378 = vweird.f32 %v372
    %vm379 = vweird.f32 %v373
    %vm380 = vmor %vm378, %vm379
    %v381 = vsel %vm380, %v373, %v377
    %v382 = vand.u32 2147483647, %v372
    %vm383 = vcmp.eq.f32.partialorder %v382, 8.507059e+37
    %v384 = vand.u32 %v372, 2147483648
    %v385 = vor.u32 1.1754944e-38, %v384
    %v386 = vsel %vm383, %v385, %v381
    %v387 = vmul.f32 1.0, %v386
    %v388 = vsel %vm279, %v368, %v387
    %v389 = vmul.f32 %v388, %v335
    %391 = vrot.lane.b32.xlu0 %v388, 64
    %v392 = vpop.permute.xlu0 %391
    %v394 = vmul.f32 %v388, %v392
    %396 = vrot.lane.b32.xlu0 %v394, 32
    %v397 = vpop.permute.xlu0 %396
    %v399 = vadd.f32 %v389, %v397
    %v400 = vtanh.pop %v399
    %402 = vrot.lane.b32.xlu0 %v400, 64
    %v403 = vpop.permute.xlu0 %402
    %v405 = vmul.f32 %v388, %v403
    %407 = vrot.lane.b32.xlu0 %v405, 32
    %v408 = vpop.permute.xlu0 %407
    %v409 = vsel %vm111, %v408, 0
    %411 = vmatpush.msra.mxu0 0.0
    %412 = vmatpush.msra.mxu0 0.0
    %413 = vmatpush.msra.mxu0 0.0
    %414 = vmatpush.msra.mxu0 0.0
    %415 = vmatpush.msra.mxu0 0.0
    %416 = vmatpush.msra.mxu0 0.0
    %417 = vmatpush.msra.mxu0 0.0
    %418 = vmatpush.msra.mxu0 0.0
    %419 = vmatpush.msra.mxu0 0.0
    %420 = vmatpush.msra.mxu0 0.0
    %421 = vmatpush.msra.mxu0 0.0
    %422 = vmatpush.msra.mxu0 0.0
    %423 = vmatpush.msra.mxu0 %v276
    %424 = vmatpush.msra.mxu0 %v275
    %425 = vmatpush.msra.mxu0 %v274
    %426 = vmatpush.msra.mxu0 %v273
    %427 = vmatmul.f32.gmra.mxu0 %v409
    %v428 = vpop.f32.mrf.mxu0
    %v429 = vadd.f32 0.0, %v428
    %430 = vdwg.mxu0
    %v431 = vadd.f32 %v225, %v429
    %v432 = vtanh.pop %v431
    %v433 = vxor.u32 %v431, 2147483648
    %v434 = vmul.f32 %v433, 1.442695
    %v435 = vpow.pop %v434
    %v436 = vadd.f32 %v435, 1.0
    %v437 = vrcp.pop %v436
    %v438 = vmul.f32 %v436, %v437
    %v439 = vsub.f32 1.0, %v438
    %v440 = vmul.f32 %v437, %v439
    %v441 = vadd.f32 %v437, %v440
    %vm442 = vweird.f32 %v436
    %vm443 = vweird.f32 %v437
    %vm444 = vmor %vm442, %vm443
    %v445 = vsel %vm444, %v437, %v441
    %v446 = vand.u32 2147483647, %v436
    %vm447 = vcmp.eq.f32.partialorder %v446, 8.507059e+37
    %v448 = vand.u32 %v436, 2147483648
    %v449 = vor.u32 1.1754944e-38, %v448
    %v450 = vsel %vm447, %v449, %v445
    %v451 = vmul.f32 1.0, %v450
    %v452 = vsel %vm279, %v432, %v451
    %v453 = vmul.f32 %v452, %v399
    %455 = vrot.lane.b32.xlu0 %v452, 64
    %v456 = vpop.permute.xlu0 %455
    %v458 = vmul.f32 %v452, %v456
    %460 = vrot.lane.b32.xlu0 %v458, 32
    %v461 = vpop.permute.xlu0 %460
    %v463 = vadd.f32 %v453, %v461
    %v464 = vtanh.pop %v463
    %466 = vrot.lane.b32.xlu0 %v464, 64
    %v467 = vpop.permute.xlu0 %466
    %v469 = vmul.f32 %v452, %v467
    %471 = vrot.lane.b32.xlu0 %v469, 32
    %v472 = vpop.permute.xlu0 %471
    %v473 = vsel %vm111, %v472, 0
    %475 = vmatpush.msra.mxu0 0.0
    %476 = vmatpush.msra.mxu0 0.0
    %477 = vmatpush.msra.mxu0 0.0
    %478 = vmatpush.msra.mxu0 0.0
    %479 = vmatpush.msra.mxu0 0.0
    %480 = vmatpush.msra.mxu0 0.0
    %481 = vmatpush.msra.mxu0 0.0
    %482 = vmatpush.msra.mxu0 0.0
    %483 = vmatpush.msra.mxu0 0.0
    %484 = vmatpush.msra.mxu0 0.0
    %485 = vmatpush.msra.mxu0 0.0
    %486 = vmatpush.msra.mxu0 0.0
    %487 = vmatpush.msra.mxu0 %v276
    %488 = vmatpush.msra.mxu0 %v275
    %489 = vmatpush.msra.mxu0 %v274
    %490 = vmatpush.msra.mxu0 %v273
    %491 = vmatmul.f32.gmra.mxu0 %v473
    %v492 = vpop.f32.mrf.mxu0
    %v493 = vadd.f32 0.0, %v492
    %494 = vdwg.mxu0
    %v495 = vadd.f32 %v271, %v493
    %v496 = vtanh.pop %v495
    %v497 = vxor.u32 %v495, 2147483648
    %v498 = vmul.f32 %v497, 1.442695
    %v499 = vpow.pop %v498
    %v500 = vadd.f32 %v499, 1.0
    %v501 = vrcp.pop %v500
    %v502 = vmul.f32 %v500, %v501
    %v503 = vsub.f32 1.0, %v502
    %v504 = vmul.f32 %v501, %v503
    %v505 = vadd.f32 %v501, %v504
    %vm506 = vweird.f32 %v500
    %vm507 = vweird.f32 %v501
    %vm508 = vmor %vm506, %vm507
    %v509 = vsel %vm508, %v501, %v505
    %v510 = vand.u32 2147483647, %v500
    %vm511 = vcmp.eq.f32.partialorder %v510, 8.507059e+37
    %v512 = vand.u32 %v500, 2147483648
    %v513 = vor.u32 1.1754944e-38, %v512
    %v514 = vsel %vm511, %v513, %v509
    %v515 = vmul.f32 1.0, %v514
    %v516 = vsel %vm279, %v496, %v515
    %v517 = vmul.f32 %v516, %v463
    %519 = vrot.lane.b32.xlu0 %v516, 64
    %v520 = vpop.permute.xlu0 %519
    %v522 = vmul.f32 %v516, %v520
    %524 = vrot.lane.b32.xlu0 %v522, 32
    %v525 = vpop.permute.xlu0 %524
    %v527 = vadd.f32 %v517, %v525
    %v528 = vtanh.pop %v527
    %530 = vrot.lane.b32.xlu0 %v528, 64
    %v531 = vpop.permute.xlu0 %530
    %v533 = vmul.f32 %v516, %v531
    %535 = vrot.lane.b32.xlu0 %v533, 32
    %v536 = vpop.permute.xlu0 %535
    %538 = vst.msk [vmem:[#allocation8] sm:$0xff] %vm111, %v536
    // Predicated region
    $region34: #{model_forward_entities.1} parent=1 // pred_check
      _
    $region35: #{model_forward_entities.1} parent=1 // pred_check_branch
      %540 = sbr.rel (0) target = $region37
    $region36: #{model_forward_entities.1} parent=1 // pred_region
      %542 = vsyncadd [#allocation4], 0
      %s544 = sshll.u32 [#allocation8], 4
      %s545 = int_to_ptr.vmem [resolvable:$true] %s544
      %s546 = sshll.u32 %s5, 4
      %s547 = int_to_ptr.hbm [resolvable:$true] %s546
      %549 = dma.vmem_to_hbm [thread:$0]  %s545, 128, %s547, [#allocation4]
    $region37: #{model_forward_entities.1} parent=1 // pred_fallthru
      _
    // Predicated region
    $region38: #{model_forward_entities.1} parent=1 // pred_check
      _
    $region39: #{model_forward_entities.1} parent=1 // pred_check_branch
      %551 = sbr.rel (0) target = $region41
    $region40: #{model_forward_entities.1} parent=1 // pred_region
      %553 = dma.done [#allocation4], 128
    $region41: #{model_forward_entities.1} parent=1 // pred_fallthru
      _
    %554 = vsyncpa [#allocation3], 1
    %555 = vsyncpa [#allocation6], 1
    %556 = vsyncpa [#allocation4], 1

</llo_original>
